<compile_context>
chip_gen: v7x
topology: tpu7x:2x2x1
jax: 0.10.0
libtpu: 0.0.40
codegen_flags: <defaults>
</compile_context>

<pallas_src>
import functools

import jax
import jax.numpy as jnp
from jax.experimental import pallas as pl
from jax.experimental.pallas import tpu as pltpu


def _pick_block_items(B, L, lane_budget=2048):
    """Largest divisor bt of B with bt*L <= lane_budget, preferring 128-aligned slabs."""
    divisors = [d for d in range(1, B + 1) if B % d == 0]
    fit = [d for d in divisors if d * L <= lane_budget] or [1]
    aligned = [d for d in fit if (d * L) % 128 == 0]
    return (aligned or fit)[-1]


def _conv3_relu(x, w_ref, b_ref, kill_t0, kill_tlast, bt):
    """Fused k=3 conv + bias + ReLU on a time-major slab.

    x:      (C_in, N) with N = L*bt, lane index = t*bt + item
    w_ref:  (C_out, 3*C_in)  -- taps unfolded as [tap0 | tap1 | tap2]
    b_ref:  (C_out, 1) f32
    """
    x = x.astype(w_ref.dtype)
    n = x.shape[1]
    zero = jnp.zeros((), x.dtype)
    # Shift by one whole time step (= bt lanes); mask kills the wrapped columns,
    # which doubles as the conv's zero padding and the batch-item boundary guard.
    x_prev = jnp.where(kill_t0, zero, pltpu.roll(x, bt, axis=1))        # x[t-1]
    x_next = jnp.where(kill_tlast, zero, pltpu.roll(x, n - bt, axis=1))  # x[t+1]
    x_unf = jnp.concatenate([x_prev, x, x_next], axis=0)                # (3*C_in, N)
    y = jnp.dot(w_ref[...], x_unf, preferred_element_type=jnp.float32)  # (C_out, N) f32
    return jnp.maximum(y + b_ref[...], 0.0)


def _segment_max_time(h, L, bt):
    """Max over the time axis of a time-major slab: (C, L*bt) -> (C, bt)."""
    cur, cur_l = h, L
    while cur_l > 1:
        half = cur_l // 2
        lo = cur[:, : half * bt]
        hi = cur[:, half * bt: 2 * half * bt]
        folded = jnp.maximum(lo, hi)
        if cur_l % 2:
            tail = cur[:, 2 * half * bt:]                        # leftover time step
            head = jnp.maximum(folded[:, :bt], tail)
            folded = jnp.concatenate([head, folded[:, bt:]], axis=1)
        cur, cur_l = folded, half
    return cur


def block_prenet_kernel(x_ref, w1_ref, b1_ref, w2_ref, b2_ref, o_ref, *, L, bt):
    n = L * bt
    x = x_ref[0]                                                  # (idim, N)

    # Boundary masks (computed once, reused by both conv layers).
    lane = jax.lax.broadcasted_iota(jnp.int32, (1, n), 1)
    kill_t0 = lane < bt                                           # t == 0 columns
    kill_tlast = lane >= (L - 1) * bt                             # t == L-1 columns

    h1 = _conv3_relu(x, w1_ref, b1_ref, kill_t0, kill_tlast, bt)   # (n_chans, N) f32
    h2 = _conv3_relu(h1, w2_ref, b2_ref, kill_t0, kill_tlast, bt)  # (n_chans, N) f32

    o_ref[0] = _segment_max_time(h2, L, bt).astype(o_ref.dtype)    # (n_chans, bt)


def block_prenet(x, w1, b1, w2, b2, *, compute_dtype=jnp.bfloat16, lane_budget=2048):
    """x: (B, idim, L); w*: torch layout (C_out, C_in, 3); b*: (C_out,) -> (B, n_chans, 1)."""
    B, c_in, L = x.shape
    n_chans = w1.shape[0]
    bt = _pick_block_items(B, L, lane_budget)
    g = B // bt
    n = bt * L

    # (B, C, L) -> (G, C, L*bt): time-major, batch-item-minor slab per grid step.
    x_slab = (x.reshape(g, bt, c_in, L)
               .transpose(0, 2, 3, 1)
               .reshape(g, c_in, n)
               .astype(compute_dtype))

    # Unfold conv taps into the contraction dim: (C_out, C_in, 3) -> (C_out, 3*C_in),
    # ordered [tap0 (x[t-1]) | tap1 (x[t]) | tap2 (x[t+1])] to match x_unf.
    w1f = w1.transpose(0, 2, 1).reshape(n_chans, 3 * c_in).astype(compute_dtype)
    w2f = w2.transpose(0, 2, 1).reshape(n_chans, 3 * n_chans).astype(compute_dtype)
    b1c = b1.reshape(n_chans, 1).astype(jnp.float32)
    b2c = b2.reshape(n_chans, 1).astype(jnp.float32)

    kernel = functools.partial(block_prenet_kernel, L=L, bt=bt)
    out = pl.pallas_call(
        kernel,
        out_shape=jax.ShapeDtypeStruct((g, n_chans, bt), jnp.float32),
        grid_spec=pltpu.PrefetchScalarGridSpec(
            num_scalar_prefetch=0,
            grid=(g,),
            in_specs=[
                pl.BlockSpec((1, c_in, n), lambda i: (i, 0, 0)),
                pl.BlockSpec((n_chans, 3 * c_in), lambda i: (0, 0)),
                pl.BlockSpec((n_chans, 1), lambda i: (0, 0)),
                pl.BlockSpec((n_chans, 3 * n_chans), lambda i: (0, 0)),
                pl.BlockSpec((n_chans, 1), lambda i: (0, 0)),
            ],
            out_specs=pl.BlockSpec((1, n_chans, bt), lambda i: (i, 0, 0)),
        ),
        compiler_params=pltpu.CompilerParams(
            dimension_semantics=("parallel",),
            vmem_limit_bytes=32 * 1024 * 1024,
        ),
    )(x_slab, w1f, b1c, w2f, b2c)

    # (G, n_chans, bt) -> (B, n_chans, 1)  (pure layout plumbing in the wrapper)
    return out.transpose(0, 2, 1).reshape(B, n_chans, 1)


def _reference(x, w1_oik, b1, w2_oik, b2):
    """Pure-JAX reference mirroring torch Conv1d (NCW / OIW) semantics (f32)."""
    dn = ("NCH", "OIH", "NCH")
    y = jax.lax.conv_general_dilated(x, w1_oik, window_strides=(1,),
                                     padding=((1, 1),), dimension_numbers=dn)
    y = jnp.maximum(y + b1[None, :, None], 0.0)
    y = jax.lax.conv_general_dilated(y, w2_oik, window_strides=(1,),
                                     padding=((1, 1),), dimension_numbers=dn)
    y = jnp.maximum(y + b2[None, :, None], 0.0)
    return jnp.max(y, axis=-1, keepdims=True)


if __name__ == "__main__":
    B, idim, L, n_chans = 8, 8, 16, 32

    key = jax.random.PRNGKey(0)
    k_x, k_w1, k_b1, k_w2, k_b2 = jax.random.split(key, 5)

    x = jax.random.normal(k_x, (B, idim, L), dtype=jnp.float32)
    # Parameters in torch Conv1d layout (C_out, C_in, K).
    w1 = 0.1 * jax.random.normal(k_w1, (n_chans, idim, 3), dtype=jnp.float32)
    b1 = 0.1 * jax.random.normal(k_b1, (n_chans,), dtype=jnp.float32)
    w2 = 0.1 * jax.random.normal(k_w2, (n_chans, n_chans, 3), dtype=jnp.float32)
    b2 = 0.1 * jax.random.normal(k_b2, (n_chans,), dtype=jnp.float32)

    ref = _reference(x, w1, b1, w2, b2)

    # f32 MXU-input path: tight check against the f32 reference.
    out_f32 = jax.block_until_ready(
        block_prenet(x, w1, b1, w2, b2, compute_dtype=jnp.float32))
    assert out_f32.shape == (B, n_chans, 1), out_f32.shape
    assert jnp.allclose(out_f32, ref, atol=1e-4, rtol=1e-4), "f32 mismatch vs reference"

    # bf16 MXU-input path (f32 accumulation/epilogue): looser tolerance.
    out_bf16 = jax.block_until_ready(
        block_prenet(x, w1, b1, w2, b2, compute_dtype=jnp.bfloat16))
    assert out_bf16.shape == (B, n_chans, 1), out_bf16.shape
    assert jnp.allclose(out_bf16, ref, atol=2e-2, rtol=2e-2), "bf16 mismatch vs reference"

    print("KERNEL_OK")
</pallas_src>

<mosaic_0001>
module attributes {stable_mosaic.version = 11 : i64} {
  func.func @block_prenet_kernel(%arg0: i32, %arg1: memref<1x8x128xf32, #tpu.memory_space<vmem>>, %arg2: memref<32x24xf32, #tpu.memory_space<vmem>>, %arg3: memref<32x1xf32, #tpu.memory_space<vmem>>, %arg4: memref<32x96xf32, #tpu.memory_space<vmem>>, %arg5: memref<32x1xf32, #tpu.memory_space<vmem>>, %arg6: memref<1x32x8xf32, #tpu.memory_space<vmem>>) attributes {dimension_semantics = [#tpu.dimension_semantics<parallel>], iteration_bounds = array<i64: 1>, scalar_prefetch = 0 : i64, scratch_operands = 0 : i64, tpu.core_type = #tpu.core_type<tc>, window_params = [{transform_indices = @transform_0, window_bounds = array<i64: 1, 8, 128>}, {pipeline_mode = #tpu.pipeline_mode<synchronous>, transform_indices = @transform_1, window_bounds = array<i64: 32, 24>}, {pipeline_mode = #tpu.pipeline_mode<synchronous>, transform_indices = @transform_2, window_bounds = array<i64: 32, 1>}, {pipeline_mode = #tpu.pipeline_mode<synchronous>, transform_indices = @transform_3, window_bounds = array<i64: 32, 96>}, {pipeline_mode = #tpu.pipeline_mode<synchronous>, transform_indices = @transform_4, window_bounds = array<i64: 32, 1>}, {transform_indices = @transform_5, window_bounds = array<i64: 1, 32, 8>}]} {
    %c0 = arith.constant 0 : index
    %c0_0 = arith.constant 0 : index
    %c0_1 = arith.constant 0 : index
    %0 = vector.load %arg1[%c0, %c0_0, %c0_1] : memref<1x8x128xf32, #tpu.memory_space<vmem>>, vector<1x8x128xf32>
    %1 = vector.shape_cast %0 : vector<1x8x128xf32> to vector<8x128xf32>
    %2 = tpu.iota {dimensions = array<i32: 1>} : vector<1x128xi32>
    %c8_i32 = arith.constant 8 : i32
    %3 = vector.broadcast %c8_i32 : i32 to vector<1x128xi32>
    %4 = arith.cmpi slt, %2, %3 : vector<1x128xi32>
    %c120_i32 = arith.constant 120 : i32
    %5 = vector.broadcast %c120_i32 : i32 to vector<1x128xi32>
    %6 = arith.cmpi sge, %2, %5 : vector<1x128xi32>
    %c8_i32_2 = arith.constant 8 : i32
    %7 = tpu.dynamic_rotate %1 by %c8_i32_2 dim 1 : vector<8x128xf32>, i32 -> vector<8x128xf32>
    %cst = arith.constant 0.000000e+00 : f32
    %8 = vector.shape_cast %4 : vector<1x128xi1> to vector<1x128xi1>
    %9 = vector.broadcast %8 : vector<1x128xi1> to vector<8x128xi1>
    %10 = vector.broadcast %cst : f32 to vector<8x128xf32>
    %11 = arith.select %9, %10, %7 : vector<8x128xi1>, vector<8x128xf32>
    %c120_i32_3 = arith.constant 120 : i32
    %12 = tpu.dynamic_rotate %1 by %c120_i32_3 dim 1 : vector<8x128xf32>, i32 -> vector<8x128xf32>
    %cst_4 = arith.constant 0.000000e+00 : f32
    %13 = vector.shape_cast %6 : vector<1x128xi1> to vector<1x128xi1>
    %14 = vector.broadcast %13 : vector<1x128xi1> to vector<8x128xi1>
    %15 = vector.broadcast %cst_4 : f32 to vector<8x128xf32>
    %16 = arith.select %14, %15, %12 : vector<8x128xi1>, vector<8x128xf32>
    %17 = tpu.concatenate %11, %1, %16 in 0 : vector<8x128xf32>, vector<8x128xf32>, vector<8x128xf32> -> vector<24x128xf32>
    %c0_5 = arith.constant 0 : index
    %c0_6 = arith.constant 0 : index
    %18 = vector.load %arg2[%c0_5, %c0_6] : memref<32x24xf32, #tpu.memory_space<vmem>>, vector<32x24xf32>
    %cst_7 = arith.constant dense<0.000000e+00> : vector<32x128xf32>
    %19 = tpu.matmul %18, %17, %cst_7 {dimension_numbers = #tpu.dot_dimension_numbers<[1], [0], [0], [1], [0, 0, 1, 1], [], []>} : vector<32x24xf32>, vector<24x128xf32>, vector<32x128xf32> -> vector<32x128xf32>
    %c0_8 = arith.constant 0 : index
    %c0_9 = arith.constant 0 : index
    %20 = vector.load %arg3[%c0_8, %c0_9] : memref<32x1xf32, #tpu.memory_space<vmem>>, vector<32x1xf32>
    %21 = vector.broadcast %20 : vector<32x1xf32> to vector<32x128xf32>
    %22 = arith.addf %19, %21 : vector<32x128xf32>
    %cst_10 = arith.constant 0.000000e+00 : f32
    %23 = vector.broadcast %cst_10 : f32 to vector<32x128xf32>
    %24 = arith.maximumf %22, %23 : vector<32x128xf32>
    %c8_i32_11 = arith.constant 8 : i32
    %25 = tpu.dynamic_rotate %24 by %c8_i32_11 dim 1 : vector<32x128xf32>, i32 -> vector<32x128xf32>
    %cst_12 = arith.constant 0.000000e+00 : f32
    %26 = vector.shape_cast %4 : vector<1x128xi1> to vector<1x128xi1>
    %27 = vector.broadcast %26 : vector<1x128xi1> to vector<32x128xi1>
    %28 = vector.broadcast %cst_12 : f32 to vector<32x128xf32>
    %29 = arith.select %27, %28, %25 : vector<32x128xi1>, vector<32x128xf32>
    %c120_i32_13 = arith.constant 120 : i32
    %30 = tpu.dynamic_rotate %24 by %c120_i32_13 dim 1 : vector<32x128xf32>, i32 -> vector<32x128xf32>
    %cst_14 = arith.constant 0.000000e+00 : f32
    %31 = vector.shape_cast %6 : vector<1x128xi1> to vector<1x128xi1>
    %32 = vector.broadcast %31 : vector<1x128xi1> to vector<32x128xi1>
    %33 = vector.broadcast %cst_14 : f32 to vector<32x128xf32>
    %34 = arith.select %32, %33, %30 : vector<32x128xi1>, vector<32x128xf32>
    %35 = tpu.concatenate %29, %24, %34 in 0 : vector<32x128xf32>, vector<32x128xf32>, vector<32x128xf32> -> vector<96x128xf32>
    %c0_15 = arith.constant 0 : index
    %c0_16 = arith.constant 0 : index
    %36 = vector.load %arg4[%c0_15, %c0_16] : memref<32x96xf32, #tpu.memory_space<vmem>>, vector<32x96xf32>
    %cst_17 = arith.constant dense<0.000000e+00> : vector<32x128xf32>
    %37 = tpu.matmul %36, %35, %cst_17 {dimension_numbers = #tpu.dot_dimension_numbers<[1], [0], [0], [1], [0, 0, 1, 1], [], []>} : vector<32x96xf32>, vector<96x128xf32>, vector<32x128xf32> -> vector<32x128xf32>
    %c0_18 = arith.constant 0 : index
    %c0_19 = arith.constant 0 : index
    %38 = vector.load %arg5[%c0_18, %c0_19] : memref<32x1xf32, #tpu.memory_space<vmem>>, vector<32x1xf32>
    %39 = vector.broadcast %38 : vector<32x1xf32> to vector<32x128xf32>
    %40 = arith.addf %37, %39 : vector<32x128xf32>
    %cst_20 = arith.constant 0.000000e+00 : f32
    %41 = vector.broadcast %cst_20 : f32 to vector<32x128xf32>
    %42 = arith.maximumf %40, %41 : vector<32x128xf32>
    %43 = vector.extract_strided_slice %42 {offsets = [0, 0], sizes = [32, 64], strides = [1, 1]} : vector<32x128xf32> to vector<32x64xf32>
    %44 = vector.extract_strided_slice %42 {offsets = [0, 64], sizes = [32, 64], strides = [1, 1]} : vector<32x128xf32> to vector<32x64xf32>
    %45 = arith.maximumf %43, %44 : vector<32x64xf32>
    %46 = vector.extract_strided_slice %45 {offsets = [0, 0], sizes = [32, 32], strides = [1, 1]} : vector<32x64xf32> to vector<32x32xf32>
    %47 = vector.extract_strided_slice %45 {offsets = [0, 32], sizes = [32, 32], strides = [1, 1]} : vector<32x64xf32> to vector<32x32xf32>
    %48 = arith.maximumf %46, %47 : vector<32x32xf32>
    %49 = vector.extract_strided_slice %48 {offsets = [0, 0], sizes = [32, 16], strides = [1, 1]} : vector<32x32xf32> to vector<32x16xf32>
    %50 = vector.extract_strided_slice %48 {offsets = [0, 16], sizes = [32, 16], strides = [1, 1]} : vector<32x32xf32> to vector<32x16xf32>
    %51 = arith.maximumf %49, %50 : vector<32x16xf32>
    %52 = vector.extract_strided_slice %51 {offsets = [0, 0], sizes = [32, 8], strides = [1, 1]} : vector<32x16xf32> to vector<32x8xf32>
    %53 = vector.extract_strided_slice %51 {offsets = [0, 8], sizes = [32, 8], strides = [1, 1]} : vector<32x16xf32> to vector<32x8xf32>
    %54 = arith.maximumf %52, %53 : vector<32x8xf32>
    %c0_21 = arith.constant 0 : index
    %c0_22 = arith.constant 0 : index
    %c0_23 = arith.constant 0 : index
    %55 = vector.load %arg6[%c0_21, %c0_22, %c0_23] : memref<1x32x8xf32, #tpu.memory_space<vmem>>, vector<1x32x8xf32>
    %56 = vector.shape_cast %55 : vector<1x32x8xf32> to vector<32x8xf32>
    %57 = vector.shape_cast %54 : vector<32x8xf32> to vector<1x32x8xf32>
    tpu.vector_store %arg6[%c0_21, %c0_22, %c0_23], %57 {strides = array<i32>} : memref<1x32x8xf32, #tpu.memory_space<vmem>>, vector<1x32x8xf32>,
    return
  }
  func.func @transform_0(%arg0: i32) -> (i32, i32, i32) {
    %c0_i32 = arith.constant 0 : i32
    %c0_i32_0 = arith.constant 0 : i32
    %c0_i32_1 = arith.constant 0 : i32
    return %arg0, %c0_i32, %c0_i32_0 : i32, i32, i32
  }
  func.func @transform_1(%arg0: i32) -> (i32, i32) {
    %c0_i32 = arith.constant 0 : i32
    %c0_i32_0 = arith.constant 0 : i32
    %c0_i32_1 = arith.constant 0 : i32
    return %c0_i32, %c0_i32_0 : i32, i32
  }
  func.func @transform_2(%arg0: i32) -> (i32, i32) {
    %c0_i32 = arith.constant 0 : i32
    %c0_i32_0 = arith.constant 0 : i32
    %c0_i32_1 = arith.constant 0 : i32
    return %c0_i32, %c0_i32_0 : i32, i32
  }
  func.func @transform_3(%arg0: i32) -> (i32, i32) {
    %c0_i32 = arith.constant 0 : i32
    %c0_i32_0 = arith.constant 0 : i32
    %c0_i32_1 = arith.constant 0 : i32
    return %c0_i32, %c0_i32_0 : i32, i32
  }
  func.func @transform_4(%arg0: i32) -> (i32, i32) {
    %c0_i32 = arith.constant 0 : i32
    %c0_i32_0 = arith.constant 0 : i32
    %c0_i32_1 = arith.constant 0 : i32
    return %c0_i32, %c0_i32_0 : i32, i32
  }
  func.func @transform_5(%arg0: i32) -> (i32, i32, i32) {
    %c0_i32 = arith.constant 0 : i32
    %c0_i32_0 = arith.constant 0 : i32
    %c0_i32_1 = arith.constant 0 : i32
    return %arg0, %c0_i32, %c0_i32_0 : i32, i32, i32
  }
}

</mosaic_0001>

<llo_original>
// kernel: tpu_custom_call.1
$region0: #{tpu_custom_call.1}
  #allocation0 [shape = 'u32[]', space=smem, size = 0x4, offset = 0x4, fixed_abs, tag = 'smem constant byte address 0x4 - core index']
  #allocation1 [shape = 'u32[144,128]{1,0:T(1,128)}', space=vmem, size = 0x12000, scoped, tag = 'internal scratch']
  %s0 = inlined_call_operand.vmem [shape: f32[1,8,128], index: 0, kind: input, shape index: {}]
  %s1 = inlined_call_operand.vmem [shape: f32[32,24], index: 1, kind: input, shape index: {}]
  %s2 = inlined_call_operand.vmem [shape: f32[32,1], index: 2, kind: input, shape index: {}]
  %s3 = inlined_call_operand.vmem [shape: f32[32,96], index: 3, kind: input, shape index: {}]
  %s4 = inlined_call_operand.vmem [shape: f32[32,1], index: 4, kind: input, shape index: {}]
  %s5 = inlined_call_operand.vmem [shape: f32[1,32,8], index: 5, kind: output, shape index: {}]
  %s6 = sld [smem:[#allocation0]]
  $region30: #{tpu_custom_call.1} parent=0
    _
  %s8 = ssub.s32 1, %s6
  %s9 = scalar_select 0, %s8, %s6
  // Predicated region
  $region2: #{tpu_custom_call.1} parent=0 // pred_check
    _
  $region3: #{tpu_custom_call.1} parent=0 // pred_check_branch
    %11 = sbr.rel (0) target = $region5
  $region4: #{tpu_custom_call.1} parent=0 // pred_region
    _
  $region5: #{tpu_custom_call.1} parent=0 // pred_fallthru
    _
  // Predicated region
  $region6: #{tpu_custom_call.1} parent=0 // pred_check
    _
  $region7: #{tpu_custom_call.1} parent=0 // pred_check_branch
    %13 = sbr.rel (0) target = $region9
  $region8: #{tpu_custom_call.1} parent=0 // pred_region
    _
  $region9: #{tpu_custom_call.1} parent=0 // pred_fallthru
    _
  // Predicated region
  $region10: #{tpu_custom_call.1} parent=0 // pred_check
    _
  $region11: #{tpu_custom_call.1} parent=0 // pred_check_branch
    %15 = sbr.rel (0) target = $region13
  $region12: #{tpu_custom_call.1} parent=0 // pred_region
    _
  $region13: #{tpu_custom_call.1} parent=0 // pred_fallthru
    _
  // Predicated region
  $region14: #{tpu_custom_call.1} parent=0 // pred_check
    _
  $region15: #{tpu_custom_call.1} parent=0 // pred_check_branch
    %17 = sbr.rel (0) target = $region17
  $region16: #{tpu_custom_call.1} parent=0 // pred_region
    _
  $region17: #{tpu_custom_call.1} parent=0 // pred_fallthru
    _
  // Predicated region
  $region18: #{tpu_custom_call.1} parent=0 // pred_check
    _
  $region19: #{tpu_custom_call.1} parent=0 // pred_check_branch
    %19 = sbr.rel (0) target = $region21
  $region20: #{tpu_custom_call.1} parent=0 // pred_region
    _
  $region21: #{tpu_custom_call.1} parent=0 // pred_fallthru
    _
  %v20 = vld [vmem:[%s0] sm:$0xff]
  %v21 = vlaneseq
  %v22 = vand.u32 %v21, 127
  %vm23 = vcmp.lt.s32.totalorder %v22, 8
  %vm24 = vcmp.ge.s32.totalorder %v22, 120
  %25 = vrot.lane.b32.xlu0 %v20, 8
  %v26 = vpop.permute.xlu0 %25
  %v27 = vsel %vm23, 1, 0
  %vm28 = vcmp.eq.s32.totalorder %v27, 1
  %v29 = vsel %vm28, 0.0, %v26
  %30 = vrot.lane.b32.xlu0 %v20, 120
  %v31 = vpop.permute.xlu0 %30
  %v32 = vsel %vm24, 1, 0
  %vm33 = vcmp.eq.s32.totalorder %v32, 1
  %v34 = vsel %vm33, 0.0, %v31
  %v35 = vld [vmem:[%s1] sm:$0xff]
  %v36 = vld [vmem:[%s1 + $0x8] sm:$0xff]
  %v37 = vld [vmem:[%s1 + $0x10] sm:$0xff]
  %v38 = vld [vmem:[%s1 + $0x18] sm:$0xff]
  %v39 = vld [vmem:[%s2] sm:$0xff]
  %v40 = vld [vmem:[%s2 + $0x8] sm:$0xff]
  %v41 = vld [vmem:[%s2 + $0x10] sm:$0xff]
  %v42 = vld [vmem:[%s2 + $0x18] sm:$0xff]
  %44 = vset.pattern.permute.xlu0 0
  %45 = vperm.xlu0 %44, %v39
  %v46 = vpop.permute.xlu0 %45
  %49 = vset.pattern.permute.xlu0 0
  %50 = vperm.xlu0 %49, %v40
  %v51 = vpop.permute.xlu0 %50
  %54 = vset.pattern.permute.xlu0 0
  %55 = vperm.xlu0 %54, %v41
  %v56 = vpop.permute.xlu0 %55
  %59 = vset.pattern.permute.xlu0 0
  %60 = vperm.xlu0 %59, %v42
  %v61 = vpop.permute.xlu0 %60
  %vm63 = vcmask 195584
  %v65 = vsel %vm63, %v35, 0
  %v68 = vsel %vm63, %v36, 0
  %v71 = vsel %vm63, %v37, 0
  %v74 = vsel %vm63, %v38, 0
  %76 = vmatprep.subr.mxu0 0.0
  %77 = vmatpush1.msra.mxu0 %v29
  %78 = vmatprep.subr.mxu0 0.0
  %79 = vmatpush1.msra.mxu0 %v20
  %80 = vmatprep.subr.mxu0 0.0
  %81 = vmatpush1.msra.mxu0 %v34
  %82 = vmatprep.subr.mxu0 0.0
  %83 = vmatpush1.msra.mxu0 0.0
  %84 = vmatprep.subr.mxu0 0.0
  %85 = vmatpush1.msra.mxu0 0.0
  %86 = vmatprep.subr.mxu0 0.0
  %87 = vmatpush1.msra.mxu0 0.0
  %88 = vmatprep.subr.mxu0 0.0
  %89 = vmatpush1.msra.mxu0 0.0
  %90 = vmatprep.subr.mxu0 0.0
  %91 = vmatpush1.msra.mxu0 0.0
  %92 = vmatprep.subr.mxu0 0.0
  %93 = vmatpush1.msra.mxu0 0.0
  %94 = vmatprep.subr.mxu0 0.0
  %95 = vmatpush1.msra.mxu0 0.0
  %96 = vmatprep.subr.mxu0 0.0
  %97 = vmatpush1.msra.mxu0 0.0
  %98 = vmatprep.subr.mxu0 0.0
  %99 = vmatpush1.msra.mxu0 0.0
  %100 = vmatprep.subr.mxu0 0.0
  %101 = vmatpush1.msra.mxu0 0.0
  %102 = vmatprep.subr.mxu0 0.0
  %103 = vmatpush1.msra.mxu0 0.0
  %104 = vmatprep.subr.mxu0 0.0
  %105 = vmatpush1.msra.mxu0 0.0
  %106 = vmatprep.subr.mxu0 0.0
  %107 = vmatpush1.msra.mxu0 0.0
  %108 = vmatprep.subr.mxu0 0.0
  %109 = vmatpush1.msra.mxu0 0.0
  %110 = vmatprep.subr.mxu0 0.0
  %111 = vmatpush1.msra.mxu0 0.0
  %112 = vmatprep.subr.mxu0 0.0
  %113 = vmatpush1.msra.mxu0 0.0
  %114 = vmatprep.subr.mxu0 0.0
  %115 = vmatpush1.msra.mxu0 0.0
  %116 = vmatprep.subr.mxu0 0.0
  %117 = vmatpush1.msra.mxu0 0.0
  %118 = vmatprep.subr.mxu0 0.0
  %119 = vmatpush1.msra.mxu0 0.0
  %120 = vmatprep.subr.mxu0 0.0
  %121 = vmatpush1.msra.mxu0 0.0
  %122 = vmatprep.subr.mxu0 0.0
  %123 = vmatpush1.msra.mxu0 0.0
  %124 = vmatprep.subr.mxu0 0.0
  %125 = vmatpush1.msra.mxu0 0.0
  %126 = vmatprep.subr.mxu0 0.0
  %127 = vmatpush1.msra.mxu0 0.0
  %128 = vmatprep.subr.mxu0 0.0
  %129 = vmatpush1.msra.mxu0 0.0
  %130 = vmatprep.subr.mxu0 0.0
  %131 = vmatpush1.msra.mxu0 0.0
  %132 = vmatprep.subr.mxu0 0.0
  %133 = vmatpush1.msra.mxu0 0.0
  %134 = vmatprep.subr.mxu0 0.0
  %135 = vmatpush1.msra.mxu0 0.0
  %136 = vmatprep.subr.mxu0 0.0
  %137 = vmatpush1.msra.mxu0 0.0
  %138 = vmatprep.subr.mxu0 0.0
  %139 = vmatpush1.msra.mxu0 0.0
  %140 = vmatprep.mubr.f32.mxu0 0.0
  %141 = vmatmul.mubr.f32.gmra.mrb[0].mxu0 %v65
  %v142 = vpop.f32.mrb[0].mxu0
  %v143 = vadd.f32 %v46, %v142
  %v144 = vpop.f32.mrb[0].mxu0
  %145 = vmatprep.mubr.f32.mxu0 0.0
  %146 = vmatmul.mubr.f32.gmra.mrb[0].mxu0 %v68
  %v147 = vpop.f32.mrb[0].mxu0
  %v148 = vadd.f32 %v51, %v147
  %v149 = vpop.f32.mrb[0].mxu0
  %150 = vmatprep.mubr.f32.mxu0 0.0
  %151 = vmatmul.mubr.f32.gmra.mrb[0].mxu0 %v71
  %v152 = vpop.f32.mrb[0].mxu0
  %v153 = vadd.f32 %v56, %v152
  %v154 = vpop.f32.mrb[0].mxu0
  %155 = vmatprep.mubr.f32.mxu0 0.0
  %156 = vmatmul.mubr.f32.gmra.mrb[0].mxu0 %v74
  %v157 = vpop.f32.mrb[0].mxu0
  %v158 = vadd.f32 %v61, %v157
  %v159 = vpop.f32.mrb[0].mxu0
  %160 = vdwg.mxu0
  %v161 = vmax.f32 %v143, 0.0
  %v162 = vmax.f32 %v148, 0.0
  %v163 = vmax.f32 %v153, 0.0
  %v164 = vmax.f32 %v158, 0.0
  %165 = vrot.lane.b32.xlu0 %v161, 8
  %v166 = vpop.permute.xlu0 %165
  %167 = vrot.lane.b32.xlu0 %v162, 8
  %v168 = vpop.permute.xlu0 %167
  %169 = vrot.lane.b32.xlu0 %v163, 8
  %v170 = vpop.permute.xlu0 %169
  %171 = vrot.lane.b32.xlu0 %v164, 8
  %v172 = vpop.permute.xlu0 %171
  %v173 = vsel %vm28, 0.0, %v166
  %v174 = vsel %vm28, 0.0, %v168
  %v175 = vsel %vm28, 0.0, %v170
  %v176 = vsel %vm28, 0.0, %v172
  %177 = vrot.lane.b32.xlu0 %v161, 120
  %v178 = vpop.permute.xlu0 %177
  %179 = vrot.lane.b32.xlu0 %v162, 120
  %v180 = vpop.permute.xlu0 %179
  %181 = vrot.lane.b32.xlu0 %v163, 120
  %v182 = vpop.permute.xlu0 %181
  %183 = vrot.lane.b32.xlu0 %v164, 120
  %v184 = vpop.permute.xlu0 %183
  %v185 = vsel %vm33, 0.0, %v178
  %v186 = vsel %vm33, 0.0, %v180
  %v187 = vsel %vm33, 0.0, %v182
  %v188 = vsel %vm33, 0.0, %v184
  %v189 = vld [vmem:[%s3] sm:$0xff]
  %v190 = vld [vmem:[%s3 + $0x8] sm:$0xff]
  %v191 = vld [vmem:[%s3 + $0x10] sm:$0xff]
  %v192 = vld [vmem:[%s3 + $0x18] sm:$0xff]
  %v193 = vld [vmem:[%s4] sm:$0xff]
  %v194 = vld [vmem:[%s4 + $0x8] sm:$0xff]
  %v195 = vld [vmem:[%s4 + $0x10] sm:$0xff]
  %v196 = vld [vmem:[%s4 + $0x18] sm:$0xff]
  %198 = vset.pattern.permute.xlu0 0
  %199 = vperm.xlu0 %198, %v193
  %v200 = vpop.permute.xlu0 %199
  %203 = vset.pattern.permute.xlu0 0
  %204 = vperm.xlu0 %203, %v194
  %v205 = vpop.permute.xlu0 %204
  %208 = vset.pattern.permute.xlu0 0
  %209 = vperm.xlu0 %208, %v195
  %v210 = vpop.permute.xlu0 %209
  %213 = vset.pattern.permute.xlu0 0
  %214 = vperm.xlu0 %213, %v196
  %v215 = vpop.permute.xlu0 %214
  %vm217 = vcmask 785408
  %v219 = vsel %vm217, %v189, 0
  %v222 = vsel %vm217, %v190, 0
  %v225 = vsel %vm217, %v191, 0
  %v228 = vsel %vm217, %v192, 0
  %230 = vmatprep.subr.mxu0 0.0
  %231 = vmatpush1.msra.mxu0 %v173
  %232 = vmatprep.subr.mxu0 0.0
  %233 = vmatpush1.msra.mxu0 %v174
  %234 = vmatprep.subr.mxu0 0.0
  %235 = vmatpush1.msra.mxu0 %v175
  %236 = vmatprep.subr.mxu0 0.0
  %237 = vmatpush1.msra.mxu0 %v176
  %238 = vmatprep.subr.mxu0 0.0
  %239 = vmatpush1.msra.mxu0 %v161
  %240 = vmatprep.subr.mxu0 0.0
  %241 = vmatpush1.msra.mxu0 %v162
  %242 = vmatprep.subr.mxu0 0.0
  %243 = vmatpush1.msra.mxu0 %v163
  %244 = vmatprep.subr.mxu0 0.0
  %245 = vmatpush1.msra.mxu0 %v164
  %246 = vmatprep.subr.mxu0 0.0
  %247 = vmatpush1.msra.mxu0 %v185
  %248 = vmatprep.subr.mxu0 0.0
  %249 = vmatpush1.msra.mxu0 %v186
  %250 = vmatprep.subr.mxu0 0.0
  %251 = vmatpush1.msra.mxu0 %v187
  %252 = vmatprep.subr.mxu0 0.0
  %253 = vmatpush1.msra.mxu0 %v188
  %254 = vmatprep.subr.mxu0 0.0
  %255 = vmatpush1.msra.mxu0 0.0
  %256 = vmatprep.subr.mxu0 0.0
  %257 = vmatpush1.msra.mxu0 0.0
  %258 = vmatprep.subr.mxu0 0.0
  %259 = vmatpush1.msra.mxu0 0.0
  %260 = vmatprep.subr.mxu0 0.0
  %261 = vmatpush1.msra.mxu0 0.0
  %262 = vmatprep.subr.mxu0 0.0
  %263 = vmatpush1.msra.mxu0 0.0
  %264 = vmatprep.subr.mxu0 0.0
  %265 = vmatpush1.msra.mxu0 0.0
  %266 = vmatprep.subr.mxu0 0.0
  %267 = vmatpush1.msra.mxu0 0.0
  %268 = vmatprep.subr.mxu0 0.0
  %269 = vmatpush1.msra.mxu0 0.0
  %270 = vmatprep.subr.mxu0 0.0
  %271 = vmatpush1.msra.mxu0 0.0
  %272 = vmatprep.subr.mxu0 0.0
  %273 = vmatpush1.msra.mxu0 0.0
  %274 = vmatprep.subr.mxu0 0.0
  %275 = vmatpush1.msra.mxu0 0.0
  %276 = vmatprep.subr.mxu0 0.0
  %277 = vmatpush1.msra.mxu0 0.0
  %278 = vmatprep.subr.mxu0 0.0
  %279 = vmatpush1.msra.mxu0 0.0
  %280 = vmatprep.subr.mxu0 0.0
  %281 = vmatpush1.msra.mxu0 0.0
  %282 = vmatprep.subr.mxu0 0.0
  %283 = vmatpush1.msra.mxu0 0.0
  %284 = vmatprep.subr.mxu0 0.0
  %285 = vmatpush1.msra.mxu0 0.0
  %286 = vmatprep.subr.mxu0 0.0
  %287 = vmatpush1.msra.mxu0 0.0
  %288 = vmatprep.subr.mxu0 0.0
  %289 = vmatpush1.msra.mxu0 0.0
  %290 = vmatprep.subr.mxu0 0.0
  %291 = vmatpush1.msra.mxu0 0.0
  %292 = vmatprep.subr.mxu0 0.0
  %293 = vmatpush1.msra.mxu0 0.0
  %294 = vmatprep.mubr.f32.mxu0 0.0
  %295 = vmatmul.mubr.f32.gmra.mrb[0].mxu0 %v219
  %v296 = vpop.f32.mrb[0].mxu0
  %v297 = vadd.f32 %v200, %v296
  %v298 = vpop.f32.mrb[0].mxu0
  %299 = vmatprep.mubr.f32.mxu0 0.0
  %300 = vmatmul.mubr.f32.gmra.mrb[0].mxu0 %v222
  %v301 = vpop.f32.mrb[0].mxu0
  %v302 = vadd.f32 %v205, %v301
  %v303 = vpop.f32.mrb[0].mxu0
  %304 = vmatprep.mubr.f32.mxu0 0.0
  %305 = vmatmul.mubr.f32.gmra.mrb[0].mxu0 %v225
  %v306 = vpop.f32.mrb[0].mxu0
  %v307 = vadd.f32 %v210, %v306
  %v308 = vpop.f32.mrb[0].mxu0
  %309 = vmatprep.mubr.f32.mxu0 0.0
  %310 = vmatmul.mubr.f32.gmra.mrb[0].mxu0 %v228
  %v311 = vpop.f32.mrb[0].mxu0
  %v312 = vadd.f32 %v215, %v311
  %v313 = vpop.f32.mrb[0].mxu0
  %314 = vdwg.mxu0
  %v315 = vmax.f32 %v297, 0.0
  %v316 = vmax.f32 %v302, 0.0
  %v317 = vmax.f32 %v307, 0.0
  %v318 = vmax.f32 %v312, 0.0
  %323 = vrot.lane.b32.xlu0 %v315, 64
  %v324 = vpop.permute.xlu0 %323
  %325 = vrot.lane.b32.xlu0 %v316, 64
  %v326 = vpop.permute.xlu0 %325
  %327 = vrot.lane.b32.xlu0 %v317, 64
  %v328 = vpop.permute.xlu0 %327
  %329 = vrot.lane.b32.xlu0 %v318, 64
  %v330 = vpop.permute.xlu0 %329
  %v335 = vmax.f32 %v315, %v324
  %v336 = vmax.f32 %v316, %v326
  %v337 = vmax.f32 %v317, %v328
  %v338 = vmax.f32 %v318, %v330
  %343 = vrot.lane.b32.xlu0 %v335, 96
  %v344 = vpop.permute.xlu0 %343
  %345 = vrot.lane.b32.xlu0 %v336, 96
  %v346 = vpop.permute.xlu0 %345
  %347 = vrot.lane.b32.xlu0 %v337, 96
  %v348 = vpop.permute.xlu0 %347
  %349 = vrot.lane.b32.xlu0 %v338, 96
  %v350 = vpop.permute.xlu0 %349
  %v355 = vmax.f32 %v335, %v344
  %v356 = vmax.f32 %v336, %v346
  %v357 = vmax.f32 %v337, %v348
  %v358 = vmax.f32 %v338, %v350
  %363 = vrot.lane.b32.xlu0 %v355, 112
  %v364 = vpop.permute.xlu0 %363
  %365 = vrot.lane.b32.xlu0 %v356, 112
  %v366 = vpop.permute.xlu0 %365
  %367 = vrot.lane.b32.xlu0 %v357, 112
  %v368 = vpop.permute.xlu0 %367
  %369 = vrot.lane.b32.xlu0 %v358, 112
  %v370 = vpop.permute.xlu0 %369
  %v375 = vmax.f32 %v355, %v364
  %v376 = vmax.f32 %v356, %v366
  %v377 = vmax.f32 %v357, %v368
  %v378 = vmax.f32 %v358, %v370
  %383 = vrot.lane.b32.xlu0 %v375, 120
  %v384 = vpop.permute.xlu0 %383
  %385 = vrot.lane.b32.xlu0 %v376, 120
  %v386 = vpop.permute.xlu0 %385
  %387 = vrot.lane.b32.xlu0 %v377, 120
  %v388 = vpop.permute.xlu0 %387
  %389 = vrot.lane.b32.xlu0 %v378, 120
  %v390 = vpop.permute.xlu0 %389
  %v395 = vmax.f32 %v375, %v384
  %v396 = vmax.f32 %v376, %v386
  %v397 = vmax.f32 %v377, %v388
  %v398 = vmax.f32 %v378, %v390
  %vm399 = vcmask 64512
  %400 = vst.msk [vmem:[%s5] sm:$0xff] %vm399, %v395
  %401 = vst.msk [vmem:[%s5 + $0x8] sm:$0xff] %vm399, %v396
  %402 = vst.msk [vmem:[%s5 + $0x10] sm:$0xff] %vm399, %v397
  %403 = vst.msk [vmem:[%s5 + $0x18] sm:$0xff] %vm399, %v398
  // Predicated region
  $region22: #{tpu_custom_call.1} parent=0 // pred_check
    _
  $region23: #{tpu_custom_call.1} parent=0 // pred_check_branch
    %405 = sbr.rel (0) target = $region25
  $region24: #{tpu_custom_call.1} parent=0 // pred_region
    _
  $region25: #{tpu_custom_call.1} parent=0 // pred_fallthru
    _
  // Predicated region
  $region26: #{tpu_custom_call.1} parent=0 // pred_check
    _
  $region27: #{tpu_custom_call.1} parent=0 // pred_check_branch
    %407 = sbr.rel (0) target = $region29
  $region28: #{tpu_custom_call.1} parent=0 // pred_region
    _
  $region29: #{tpu_custom_call.1} parent=0 // pred_fallthru
    _

</llo_original>
